<compile_context>
chip_gen: v7x
topology: tpu7x:2x2x1
jax: 0.10.0
libtpu: 0.0.40
codegen_flags: <defaults>
</compile_context>

<pallas_src>
import jax
import jax.numpy as jnp
from jax.experimental import pallas as pl
from jax.experimental.pallas import tpu as pltpu

_LANE = 128
_SUBLANE = 8


def _round_up(n, m):
    return ((n + m - 1) // m) * m


def _vmem_step_bytes(tb, tf):
    """Padded VMEM footprint of one pipelined grid step ((8,128) tile math)."""
    x_bytes = 2 * tb * _round_up(tf, _LANE) * 4            # double-buffered x tiles
    w_bytes = 2 * _round_up(tf, _SUBLANE) * _LANE * 4      # [tf, k] blocks (k pads to 128 lanes)
    o_bytes = 3 * tb * _LANE * 4                           # 2 out buffers + acc scratch (k -> 128 lanes)
    return x_bytes + w_bytes + o_bytes + (2 << 20)         # + headroom for Mosaic internal scratch


def _vmem_capacity_bytes():
    try:
        cap = getattr(pltpu.get_tpu_info(), "vmem_capacity_bytes", None)
        if cap:
            return int(cap)
    except Exception:
        pass
    return 64 << 20  # conservative fallback = v7x per-TensorCore VMEM


def _value_net_kernel(x_ref, w_ref, b_ref, o_ref, acc_ref):
    # x_ref: [tb, tf] VMEM tile, w_ref: [tf, k] VMEM tile, b_ref: [1] SMEM,
    # o_ref: [tb, k] VMEM (resident across the K axis), acc_ref: [tb, k] f32.
    kk = pl.program_id(1)

    @pl.when(kk == 0)
    def _():
        acc_ref[...] = jnp.zeros_like(acc_ref)

    acc_ref[...] += jnp.dot(x_ref[...], w_ref[...],
                            preferred_element_type=jnp.float32)

    @pl.when(kk == pl.num_programs(1) - 1)
    def _():
        o_ref[...] = (acc_ref[...] + b_ref[0]).astype(o_ref.dtype)


def value_net_forward(x, weight, bias, *, block_rows=None, block_cols=None,
                      min_pallas_rows=256, force_pallas=False):
    """Compute nn.Linear(input_size, 1)(x) = x @ weight.T + bias.

    Args:
      x:      [B, F] float32
      weight: [1, F] float32  (PyTorch layout: [out_features, in_features])
      bias:   [1]    float32
    Returns:
      [B, 1] float32
    """
    B, F = x.shape
    assert weight.shape == (1, F) and bias.shape == (1,)

    # At tiny sizes the grid-step + launch overhead dwarfs the ~KiB of work.
    if (not force_pallas) and B < min_pallas_rows:
        return x @ weight.T + bias

    # ---- small-F lane folding (free HBM reshape of a contiguous array) ------
    k = (128 // F) if (F < 128 and 128 % F == 0) else 1
    b_k = _round_up(B, k)
    x_eff = x if b_k == B else jnp.pad(x, ((0, b_k - B), (0, 0)))
    be = b_k // k                     # effective batch rows
    fe = k * F                        # effective feature dim (=128 when folded)
    x_eff = x_eff.reshape(be, fe)
    # block-diagonal fold of the weight: w_mat[j*F + f, j] = weight[0, f]
    w_mat = jnp.kron(jnp.eye(k, dtype=x.dtype), weight.reshape(F, 1))

    # ---- per-generation VMEM budget ------------------------------------------
    vmem_cap = _vmem_capacity_bytes()
    budget = int(vmem_cap * 0.60)     # ~38 MiB on v7x, ~77 MiB on v5e/v6e

    # ---- feature (K) tile ----------------------------------------------------
    if block_cols is not None:
        tf = min(int(block_cols), fe)
        assert tf == fe or tf % _LANE == 0, "block_cols must be a multiple of 128"
    elif _vmem_step_bytes(_LANE, fe) <= budget:
        tf = fe                        # whole feature dim per step (no K tiling)
    else:
        # K-tiling: largest 128-multiple that fits at tb=128, ~8 MiB x tile cap.
        per_tf = (2 * _LANE + 2 * _LANE) * 4
        fixed = 3 * _LANE * _LANE * 4 + (2 << 20)
        tf = max(_LANE, ((budget - fixed) // per_tf) // _LANE * _LANE)
        tf = min(tf, 16384, _round_up(fe, _LANE))

    if tf >= fe:
        tf, nk = fe, 1
    else:
        fe_pad = _round_up(fe, tf)
        nk = fe_pad // tf
        if fe_pad != fe:               # zero-padded features contribute nothing
            x_eff = jnp.pad(x_eff, ((0, 0), (0, fe_pad - fe)))
            w_mat = jnp.pad(w_mat, ((0, fe_pad - fe), (0, 0)))
        fe = fe_pad

    # ---- batch tile (bytes-targeted, padded accounting) ----------------------
    b_ceil = _round_up(be, _LANE)
    if block_rows is not None:
        tb = int(block_rows)
        assert tb % _LANE == 0, "block_rows must be a multiple of 128"
    else:
        target = 6 << 20               # ~6 MiB of x payload per grid step
        tb = max(_LANE, (target // (_round_up(tf, _LANE) * 4)) // _LANE * _LANE)
        while tb > _LANE and _vmem_step_bytes(tb, tf) > budget:
            tb -= _LANE
        tb = min(tb, b_ceil)
        if b_ceil >= 2 * _LANE:        # keep >= 2 steps so v7x's 2 TCs both work
            tb = min(tb, max(_LANE, (b_ceil // 2) // _LANE * _LANE))
    tb = max(tb, _LANE)

    b_pad = _round_up(be, tb)
    if b_pad != be:
        x_eff = jnp.pad(x_eff, ((0, b_pad - be), (0, 0)))
    nb = b_pad // tb

    # Explicit VMEM limit: actual padded need (+1 MiB), well under physical VMEM.
    need = _vmem_step_bytes(tb, tf)
    vmem_limit = int(min(max(need + (1 << 20), 16 << 20), vmem_cap * 3 // 4))
    vmem_limit = max(vmem_limit, need)

    out = pl.pallas_call(
        _value_net_kernel,
        out_shape=jax.ShapeDtypeStruct((b_pad, k), x.dtype),
        grid_spec=pltpu.PrefetchScalarGridSpec(
            num_scalar_prefetch=0,
            grid=(nb, nk),
            in_specs=[
                # x: one [tb, tf] tile per step (double-buffered by Pallas).
                pl.BlockSpec((tb, tf), lambda i, kk: (i, kk)),
                # folded weight: [tf, k] block along the K axis.
                pl.BlockSpec((tf, k), lambda i, kk: (kk, 0)),
                # bias: single scalar in SMEM (no padded VMEM tile).
                pl.BlockSpec(memory_space=pltpu.MemorySpace.SMEM),
            ],
            # output block resident across the K axis; written on the last K step.
            out_specs=pl.BlockSpec((tb, k), lambda i, kk: (i, 0)),
            scratch_shapes=[pltpu.VMEM((tb, k), jnp.float32)],
        ),
        compiler_params=pltpu.CompilerParams(
            dimension_semantics=("parallel", "arbitrary"),
            vmem_limit_bytes=vmem_limit,
        ),
        cost_estimate=pl.CostEstimate(
            flops=2 * b_pad * fe * k,
            transcendentals=0,
            bytes_accessed=(b_pad * fe + nb * fe * k + b_pad * k) * 4,
        ),
    )(x_eff, w_mat, bias)

    # [b_pad, k] -> [B, 1]: row-major flatten restores original batch order.
    return out.reshape(-1)[:B].reshape(B, 1)


if __name__ == "__main__":
    key = jax.random.PRNGKey(0)
    k_x, k_w, k_b = jax.random.split(key, 3)

    batch, input_size = 8, 32
    x = jax.random.normal(k_x, (batch, input_size), dtype=jnp.float32)
    weight = jax.random.normal(k_w, (1, input_size), dtype=jnp.float32) * 0.1
    bias = jax.random.normal(k_b, (1,), dtype=jnp.float32) * 0.1

    # 1) Tiny batch, folded lanes (F=32 -> k=4), single grid step.
    out = jax.block_until_ready(value_net_forward(x, weight, bias, force_pallas=True))
    ref = x @ weight.T + bias
    assert out.shape == (batch, 1), out.shape
    assert jnp.allclose(out, ref, atol=1e-5, rtol=1e-5), "mismatch (tiny)"

    # 2) Multi-step batch grid (folded: 3 tiles of 128 effective rows = 512 orig rows).
    x2 = jax.random.normal(jax.random.fold_in(k_x, 1), (1280, input_size), jnp.float32)
    out2 = jax.block_until_ready(
        value_net_forward(x2, weight, bias, block_rows=128, force_pallas=True))
    ref2 = x2 @ weight.T + bias
    assert out2.shape == (1280, 1), out2.shape
    assert jnp.allclose(out2, ref2, atol=1e-5, rtol=1e-5), "mismatch (batch-tiled)"

    # 3) Wide features, no fold, K-tiled reduction with the VMEM accumulator.
    f3 = 256
    k_x3, k_w3, k_b3 = jax.random.split(jax.random.fold_in(key, 2), 3)
    x3 = jax.random.normal(k_x3, (256, f3), dtype=jnp.float32)
    w3 = jax.random.normal(k_w3, (1, f3), dtype=jnp.float32) * 0.05
    b3 = jax.random.normal(k_b3, (1,), dtype=jnp.float32) * 0.1
    out3 = jax.block_until_ready(
        value_net_forward(x3, w3, b3, block_rows=128, block_cols=128, force_pallas=True))
    ref3 = x3 @ w3.T + b3
    assert out3.shape == (256, 1), out3.shape
    assert jnp.allclose(out3, ref3, atol=1e-4, rtol=1e-4), "mismatch (K-tiled)"

    print("KERNEL_OK")
</pallas_src>

<mosaic_0001>
module attributes {stable_mosaic.version = 11 : i64} {
  func.func @_value_net_kernel(%arg0: i32, %arg1: i32, %arg2: memref<128x128xf32, #tpu.memory_space<vmem>>, %arg3: memref<128x4xf32, #tpu.memory_space<vmem>>, %arg4: memref<1xf32, #tpu.memory_space<smem>>, %arg5: memref<128x4xf32, #tpu.memory_space<vmem>>, %arg6: memref<128x4xf32, #tpu.memory_space<vmem>>) attributes {dimension_semantics = [#tpu.dimension_semantics<parallel>, #tpu.dimension_semantics<arbitrary>], iteration_bounds = array<i64: 1, 1>, scalar_prefetch = 0 : i64, scratch_operands = 1 : i64, tpu.core_type = #tpu.core_type<tc>, window_params = [{transform_indices = @transform_0, window_bounds = array<i64: 128, 128>}, {transform_indices = @transform_1, window_bounds = array<i64: 128, 4>}, {transform_indices = @transform_2, window_bounds = array<i64: 1>}, {transform_indices = @transform_3, window_bounds = array<i64: 128, 4>}]} {
    %c0_i32 = arith.constant 0 : i32
    %0 = arith.cmpi eq, %arg1, %c0_i32 : i32
    %1 = arith.extui %0 : i1 to i32
    %c0_i32_0 = arith.constant 0 : i32
    %2 = arith.cmpi ne, %1, %c0_i32_0 : i32
    scf.if %2 {
      %cst_10 = arith.constant 0.000000e+00 : f32
      %12 = vector.broadcast %cst_10 : f32 to vector<128x4xf32>
      %c0_11 = arith.constant 0 : index
      %c0_12 = arith.constant 0 : index
      %13 = vector.load %arg6[%c0_11, %c0_12] : memref<128x4xf32, #tpu.memory_space<vmem>>, vector<128x4xf32>
      tpu.vector_store %arg6[%c0_11, %c0_12], %12 {strides = array<i32>} : memref<128x4xf32, #tpu.memory_space<vmem>>, vector<128x4xf32>,
    } else {
    }
    %c0 = arith.constant 0 : index
    %c0_1 = arith.constant 0 : index
    %3 = vector.load %arg6[%c0, %c0_1] : memref<128x4xf32, #tpu.memory_space<vmem>>, vector<128x4xf32>
    %c0_2 = arith.constant 0 : index
    %c0_3 = arith.constant 0 : index
    %4 = vector.load %arg2[%c0_2, %c0_3] : memref<128x128xf32, #tpu.memory_space<vmem>>, vector<128x128xf32>
    %c0_4 = arith.constant 0 : index
    %c0_5 = arith.constant 0 : index
    %5 = vector.load %arg3[%c0_4, %c0_5] : memref<128x4xf32, #tpu.memory_space<vmem>>, vector<128x4xf32>
    %cst = arith.constant dense<0.000000e+00> : vector<128x4xf32>
    %6 = tpu.matmul %4, %5, %cst {dimension_numbers = #tpu.dot_dimension_numbers<[1], [0], [0], [1], [0, 0, 1, 1], [], []>} : vector<128x128xf32>, vector<128x4xf32>, vector<128x4xf32> -> vector<128x4xf32>
    %7 = arith.addf %3, %6 : vector<128x4xf32>
    %c0_6 = arith.constant 0 : index
    %c0_7 = arith.constant 0 : index
    %8 = vector.load %arg6[%c0_6, %c0_7] : memref<128x4xf32, #tpu.memory_space<vmem>>, vector<128x4xf32>
    tpu.vector_store %arg6[%c0_6, %c0_7], %7 {strides = array<i32>} : memref<128x4xf32, #tpu.memory_space<vmem>>, vector<128x4xf32>,
    %c0_i32_8 = arith.constant 0 : i32
    %9 = arith.cmpi eq, %arg1, %c0_i32_8 : i32
    %10 = arith.extui %9 : i1 to i32
    %c0_i32_9 = arith.constant 0 : i32
    %11 = arith.cmpi ne, %10, %c0_i32_9 : i32
    scf.if %11 {
      %c0_10 = arith.constant 0 : index
      %c0_11 = arith.constant 0 : index
      %12 = vector.load %arg6[%c0_10, %c0_11] : memref<128x4xf32, #tpu.memory_space<vmem>>, vector<128x4xf32>
      %c0_12 = arith.constant 0 : index
      %13 = memref.load %arg4[%c0_12] : memref<1xf32, #tpu.memory_space<smem>>
      %14 = vector.broadcast %13 : f32 to vector<128x4xf32>
      %15 = arith.addf %12, %14 : vector<128x4xf32>
      %c0_13 = arith.constant 0 : index
      %c0_14 = arith.constant 0 : index
      %16 = vector.load %arg5[%c0_13, %c0_14] : memref<128x4xf32, #tpu.memory_space<vmem>>, vector<128x4xf32>
      tpu.vector_store %arg5[%c0_13, %c0_14], %15 {strides = array<i32>} : memref<128x4xf32, #tpu.memory_space<vmem>>, vector<128x4xf32>,
    } else {
    }
    return
  }
  func.func @transform_0(%arg0: i32, %arg1: i32) -> (i32, i32) {
    %c0_i32 = arith.constant 0 : i32
    return %arg0, %arg1 : i32, i32
  }
  func.func @transform_1(%arg0: i32, %arg1: i32) -> (i32, i32) {
    %c0_i32 = arith.constant 0 : i32
    %c0_i32_0 = arith.constant 0 : i32
    return %arg1, %c0_i32 : i32, i32
  }
  func.func @transform_2(%arg0: i32, %arg1: i32) -> i32 {
    %c0_i32 = arith.constant 0 : i32
    %c0_i32_0 = arith.constant 0 : i32
    return %c0_i32 : i32
  }
  func.func @transform_3(%arg0: i32, %arg1: i32) -> (i32, i32) {
    %c0_i32 = arith.constant 0 : i32
    %c0_i32_0 = arith.constant 0 : i32
    return %arg0, %c0_i32 : i32, i32
  }
}

</mosaic_0001>

<llo_original>
// kernel: tpu_custom_call.1
$region0: #{tpu_custom_call.1}
  #allocation0 [shape = 'u32[]', space=smem, size = 0x4, offset = 0x4, fixed_abs, tag = 'smem constant byte address 0x4 - core index']
  #allocation1 [shape = 'u32[144,128]{1,0:T(1,128)}', space=vmem, size = 0x12000, scoped, tag = 'internal scratch']
  #allocation2 [shape = 'f32[128,4]{1,0:T(8,128)}', space=vmem, size = 0x10000, scoped, tag = 'scratch operand']
  #allocation3 [shape = 'f32[1]{0:T(128)S(6)}', space=smem, size = 0x200, scoped, tag = 'scoped memory for tpu_custom_call.1']
  %s0 = inlined_call_operand.vmem [shape: f32[128,128], index: 0, kind: input, shape index: {}]
  %s1 = inlined_call_operand.vmem [shape: f32[128,4], index: 1, kind: input, shape index: {}]
  %s2 = inlined_call_operand.<no memory space> [shape: f32[1], index: 2, kind: input, shape index: {}]
  %s3 = inlined_call_operand.vmem [shape: f32[128,4], index: 3, kind: output, shape index: {}]
  %s4 = sld [smem:[#allocation0]]
  $region30: #{tpu_custom_call.1} parent=0
    _
  %s6 = ssub.s32 1, %s4
  %s7 = scalar_select 0, %s6, %s4
  %8 = sst [smem:[#allocation3]] %s2
  // Predicated region
  $region2: #{tpu_custom_call.1} parent=0 // pred_check
    _
  $region3: #{tpu_custom_call.1} parent=0 // pred_check_branch
    %10 = sbr.rel (0) target = $region5
  $region4: #{tpu_custom_call.1} parent=0 // pred_region
    _
  $region5: #{tpu_custom_call.1} parent=0 // pred_fallthru
    _
  // Predicated region
  $region6: #{tpu_custom_call.1} parent=0 // pred_check
    _
  $region7: #{tpu_custom_call.1} parent=0 // pred_check_branch
    %12 = sbr.rel (0) target = $region9
  $region8: #{tpu_custom_call.1} parent=0 // pred_region
    _
  $region9: #{tpu_custom_call.1} parent=0 // pred_fallthru
    _
  // Predicated region
  $region10: #{tpu_custom_call.1} parent=0 // pred_check
    _
  $region11: #{tpu_custom_call.1} parent=0 // pred_check_branch
    %14 = sbr.rel (0) target = $region13
  $region12: #{tpu_custom_call.1} parent=0 // pred_region
    _
  $region13: #{tpu_custom_call.1} parent=0 // pred_fallthru
    _
  %p15 = scmp.eq.s32.totalorder 0, 0
  // Predicated region
  $region14: #{tpu_custom_call.1} parent=0 // pred_check
    %p16 = pneg %p15
  $region15: #{tpu_custom_call.1} parent=0 // pred_check_branch
    %18 = sbr.rel (%p16) target = $region17
  $region16: #{tpu_custom_call.1} parent=0 // pred_region
    %vm19 = vcmask 31744
    %20 = vst.msk [vmem:[#allocation2] sm:$0xff] %vm19, 0.0
    %21 = vst.msk [vmem:[#allocation2 + $0x8] sm:$0xff] %vm19, 0.0
    %22 = vst.msk [vmem:[#allocation2 + $0x10] sm:$0xff] %vm19, 0.0
    %23 = vst.msk [vmem:[#allocation2 + $0x18] sm:$0xff] %vm19, 0.0
    %24 = vst.msk [vmem:[#allocation2 + $0x20] sm:$0xff] %vm19, 0.0
    %25 = vst.msk [vmem:[#allocation2 + $0x28] sm:$0xff] %vm19, 0.0
    %26 = vst.msk [vmem:[#allocation2 + $0x30] sm:$0xff] %vm19, 0.0
    %27 = vst.msk [vmem:[#allocation2 + $0x38] sm:$0xff] %vm19, 0.0
    %28 = vst.msk [vmem:[#allocation2 + $0x40] sm:$0xff] %vm19, 0.0
    %29 = vst.msk [vmem:[#allocation2 + $0x48] sm:$0xff] %vm19, 0.0
    %30 = vst.msk [vmem:[#allocation2 + $0x50] sm:$0xff] %vm19, 0.0
    %31 = vst.msk [vmem:[#allocation2 + $0x58] sm:$0xff] %vm19, 0.0
    %32 = vst.msk [vmem:[#allocation2 + $0x60] sm:$0xff] %vm19, 0.0
    %33 = vst.msk [vmem:[#allocation2 + $0x68] sm:$0xff] %vm19, 0.0
    %34 = vst.msk [vmem:[#allocation2 + $0x70] sm:$0xff] %vm19, 0.0
    %35 = vst.msk [vmem:[#allocation2 + $0x78] sm:$0xff] %vm19, 0.0
  $region17: #{tpu_custom_call.1} parent=0 // pred_fallthru
    _
  %v36 = vld [vmem:[#allocation2] sm:$0xff]
  %v37 = vld [vmem:[#allocation2 + $0x8] sm:$0xff]
  %v38 = vld [vmem:[#allocation2 + $0x10] sm:$0xff]
  %v39 = vld [vmem:[#allocation2 + $0x18] sm:$0xff]
  %v40 = vld [vmem:[#allocation2 + $0x20] sm:$0xff]
  %v41 = vld [vmem:[#allocation2 + $0x28] sm:$0xff]
  %v42 = vld [vmem:[#allocation2 + $0x30] sm:$0xff]
  %v43 = vld [vmem:[#allocation2 + $0x38] sm:$0xff]
  %v44 = vld [vmem:[#allocation2 + $0x40] sm:$0xff]
  %v45 = vld [vmem:[#allocation2 + $0x48] sm:$0xff]
  %v46 = vld [vmem:[#allocation2 + $0x50] sm:$0xff]
  %v47 = vld [vmem:[#allocation2 + $0x58] sm:$0xff]
  %v48 = vld [vmem:[#allocation2 + $0x60] sm:$0xff]
  %v49 = vld [vmem:[#allocation2 + $0x68] sm:$0xff]
  %v50 = vld [vmem:[#allocation2 + $0x70] sm:$0xff]
  %v51 = vld [vmem:[#allocation2 + $0x78] sm:$0xff]
  %v52 = vld [vmem:[%s0] sm:$0xff]
  %v53 = vld [vmem:[%s0 + $0x8] sm:$0xff]
  %v54 = vld [vmem:[%s0 + $0x10] sm:$0xff]
  %v55 = vld [vmem:[%s0 + $0x18] sm:$0xff]
  %v56 = vld [vmem:[%s0 + $0x20] sm:$0xff]
  %v57 = vld [vmem:[%s0 + $0x28] sm:$0xff]
  %v58 = vld [vmem:[%s0 + $0x30] sm:$0xff]
  %v59 = vld [vmem:[%s0 + $0x38] sm:$0xff]
  %v60 = vld [vmem:[%s0 + $0x40] sm:$0xff]
  %v61 = vld [vmem:[%s0 + $0x48] sm:$0xff]
  %v62 = vld [vmem:[%s0 + $0x50] sm:$0xff]
  %v63 = vld [vmem:[%s0 + $0x58] sm:$0xff]
  %v64 = vld [vmem:[%s0 + $0x60] sm:$0xff]
  %v65 = vld [vmem:[%s0 + $0x68] sm:$0xff]
  %v66 = vld [vmem:[%s0 + $0x70] sm:$0xff]
  %v67 = vld [vmem:[%s0 + $0x78] sm:$0xff]
  %v68 = vld [vmem:[%s1] sm:$0xff]
  %v69 = vld [vmem:[%s1 + $0x8] sm:$0xff]
  %v70 = vld [vmem:[%s1 + $0x10] sm:$0xff]
  %v71 = vld [vmem:[%s1 + $0x18] sm:$0xff]
  %v72 = vld [vmem:[%s1 + $0x20] sm:$0xff]
  %v73 = vld [vmem:[%s1 + $0x28] sm:$0xff]
  %v74 = vld [vmem:[%s1 + $0x30] sm:$0xff]
  %v75 = vld [vmem:[%s1 + $0x38] sm:$0xff]
  %v76 = vld [vmem:[%s1 + $0x40] sm:$0xff]
  %v77 = vld [vmem:[%s1 + $0x48] sm:$0xff]
  %v78 = vld [vmem:[%s1 + $0x50] sm:$0xff]
  %v79 = vld [vmem:[%s1 + $0x58] sm:$0xff]
  %v80 = vld [vmem:[%s1 + $0x60] sm:$0xff]
  %v81 = vld [vmem:[%s1 + $0x68] sm:$0xff]
  %v82 = vld [vmem:[%s1 + $0x70] sm:$0xff]
  %v83 = vld [vmem:[%s1 + $0x78] sm:$0xff]
  %84 = vmatprep.subr.mxu0 0.0
  %85 = vmatpush1.msra.mxu0 %v68
  %86 = vmatprep.subr.mxu0 0.0
  %87 = vmatpush1.msra.mxu0 %v69
  %88 = vmatprep.subr.mxu0 0.0
  %89 = vmatpush1.msra.mxu0 %v70
  %90 = vmatprep.subr.mxu0 0.0
  %91 = vmatpush1.msra.mxu0 %v71
  %92 = vmatprep.subr.mxu0 0.0
  %93 = vmatpush1.msra.mxu0 %v72
  %94 = vmatprep.subr.mxu0 0.0
  %95 = vmatpush1.msra.mxu0 %v73
  %96 = vmatprep.subr.mxu0 0.0
  %97 = vmatpush1.msra.mxu0 %v74
  %98 = vmatprep.subr.mxu0 0.0
  %99 = vmatpush1.msra.mxu0 %v75
  %100 = vmatprep.subr.mxu0 0.0
  %101 = vmatpush1.msra.mxu0 %v76
  %102 = vmatprep.subr.mxu0 0.0
  %103 = vmatpush1.msra.mxu0 %v77
  %104 = vmatprep.subr.mxu0 0.0
  %105 = vmatpush1.msra.mxu0 %v78
  %106 = vmatprep.subr.mxu0 0.0
  %107 = vmatpush1.msra.mxu0 %v79
  %108 = vmatprep.subr.mxu0 0.0
  %109 = vmatpush1.msra.mxu0 %v80
  %110 = vmatprep.subr.mxu0 0.0
  %111 = vmatpush1.msra.mxu0 %v81
  %112 = vmatprep.subr.mxu0 0.0
  %113 = vmatpush1.msra.mxu0 %v82
  %114 = vmatprep.subr.mxu0 0.0
  %115 = vmatpush1.msra.mxu0 %v83
  %116 = vmatprep.subr.mxu0 0.0
  %117 = vmatpush1.msra.mxu0 0.0
  %118 = vmatprep.subr.mxu0 0.0
  %119 = vmatpush1.msra.mxu0 0.0
  %120 = vmatprep.subr.mxu0 0.0
  %121 = vmatpush1.msra.mxu0 0.0
  %122 = vmatprep.subr.mxu0 0.0
  %123 = vmatpush1.msra.mxu0 0.0
  %124 = vmatprep.subr.mxu0 0.0
  %125 = vmatpush1.msra.mxu0 0.0
  %126 = vmatprep.subr.mxu0 0.0
  %127 = vmatpush1.msra.mxu0 0.0
  %128 = vmatprep.subr.mxu0 0.0
  %129 = vmatpush1.msra.mxu0 0.0
  %130 = vmatprep.subr.mxu0 0.0
  %131 = vmatpush1.msra.mxu0 0.0
  %132 = vmatprep.subr.mxu0 0.0
  %133 = vmatpush1.msra.mxu0 0.0
  %134 = vmatprep.subr.mxu0 0.0
  %135 = vmatpush1.msra.mxu0 0.0
  %136 = vmatprep.subr.mxu0 0.0
  %137 = vmatpush1.msra.mxu0 0.0
  %138 = vmatprep.subr.mxu0 0.0
  %139 = vmatpush1.msra.mxu0 0.0
  %140 = vmatprep.subr.mxu0 0.0
  %141 = vmatpush1.msra.mxu0 0.0
  %142 = vmatprep.subr.mxu0 0.0
  %143 = vmatpush1.msra.mxu0 0.0
  %144 = vmatprep.subr.mxu0 0.0
  %145 = vmatpush1.msra.mxu0 0.0
  %146 = vmatprep.subr.mxu0 0.0
  %147 = vmatpush1.msra.mxu0 0.0
  %148 = vmatprep.mubr.f32.mxu0 0.0
  %149 = vmatmul.mubr.f32.gmra.mrb[0].mxu0 %v52
  %v150 = vpop.f32.mrb[0].mxu0
  %v151 = vadd.f32 0.0, %v150
  %v152 = vpop.f32.mrb[0].mxu0
  %153 = vmatprep.mubr.f32.mxu0 0.0
  %154 = vmatmul.mubr.f32.gmra.mrb[0].mxu0 %v53
  %v155 = vpop.f32.mrb[0].mxu0
  %v156 = vadd.f32 0.0, %v155
  %v157 = vpop.f32.mrb[0].mxu0
  %158 = vmatprep.mubr.f32.mxu0 0.0
  %159 = vmatmul.mubr.f32.gmra.mrb[0].mxu0 %v54
  %v160 = vpop.f32.mrb[0].mxu0
  %v161 = vadd.f32 0.0, %v160
  %v162 = vpop.f32.mrb[0].mxu0
  %163 = vmatprep.mubr.f32.mxu0 0.0
  %164 = vmatmul.mubr.f32.gmra.mrb[0].mxu0 %v55
  %v165 = vpop.f32.mrb[0].mxu0
  %v166 = vadd.f32 0.0, %v165
  %v167 = vpop.f32.mrb[0].mxu0
  %168 = vmatprep.mubr.f32.mxu0 0.0
  %169 = vmatmul.mubr.f32.gmra.mrb[0].mxu0 %v56
  %v170 = vpop.f32.mrb[0].mxu0
  %v171 = vadd.f32 0.0, %v170
  %v172 = vpop.f32.mrb[0].mxu0
  %173 = vmatprep.mubr.f32.mxu0 0.0
  %174 = vmatmul.mubr.f32.gmra.mrb[0].mxu0 %v57
  %v175 = vpop.f32.mrb[0].mxu0
  %v176 = vadd.f32 0.0, %v175
  %v177 = vpop.f32.mrb[0].mxu0
  %178 = vmatprep.mubr.f32.mxu0 0.0
  %179 = vmatmul.mubr.f32.gmra.mrb[0].mxu0 %v58
  %v180 = vpop.f32.mrb[0].mxu0
  %v181 = vadd.f32 0.0, %v180
  %v182 = vpop.f32.mrb[0].mxu0
  %183 = vmatprep.mubr.f32.mxu0 0.0
  %184 = vmatmul.mubr.f32.gmra.mrb[0].mxu0 %v59
  %v185 = vpop.f32.mrb[0].mxu0
  %v186 = vadd.f32 0.0, %v185
  %v187 = vpop.f32.mrb[0].mxu0
  %188 = vmatprep.mubr.f32.mxu0 0.0
  %189 = vmatmul.mubr.f32.gmra.mrb[0].mxu0 %v60
  %v190 = vpop.f32.mrb[0].mxu0
  %v191 = vadd.f32 0.0, %v190
  %v192 = vpop.f32.mrb[0].mxu0
  %193 = vmatprep.mubr.f32.mxu0 0.0
  %194 = vmatmul.mubr.f32.gmra.mrb[0].mxu0 %v61
  %v195 = vpop.f32.mrb[0].mxu0
  %v196 = vadd.f32 0.0, %v195
  %v197 = vpop.f32.mrb[0].mxu0
  %198 = vmatprep.mubr.f32.mxu0 0.0
  %199 = vmatmul.mubr.f32.gmra.mrb[0].mxu0 %v62
  %v200 = vpop.f32.mrb[0].mxu0
  %v201 = vadd.f32 0.0, %v200
  %v202 = vpop.f32.mrb[0].mxu0
  %203 = vmatprep.mubr.f32.mxu0 0.0
  %204 = vmatmul.mubr.f32.gmra.mrb[0].mxu0 %v63
  %v205 = vpop.f32.mrb[0].mxu0
  %v206 = vadd.f32 0.0, %v205
  %v207 = vpop.f32.mrb[0].mxu0
  %208 = vmatprep.mubr.f32.mxu0 0.0
  %209 = vmatmul.mubr.f32.gmra.mrb[0].mxu0 %v64
  %v210 = vpop.f32.mrb[0].mxu0
  %v211 = vadd.f32 0.0, %v210
  %v212 = vpop.f32.mrb[0].mxu0
  %213 = vmatprep.mubr.f32.mxu0 0.0
  %214 = vmatmul.mubr.f32.gmra.mrb[0].mxu0 %v65
  %v215 = vpop.f32.mrb[0].mxu0
  %v216 = vadd.f32 0.0, %v215
  %v217 = vpop.f32.mrb[0].mxu0
  %218 = vmatprep.mubr.f32.mxu0 0.0
  %219 = vmatmul.mubr.f32.gmra.mrb[0].mxu0 %v66
  %v220 = vpop.f32.mrb[0].mxu0
  %v221 = vadd.f32 0.0, %v220
  %v222 = vpop.f32.mrb[0].mxu0
  %223 = vmatprep.mubr.f32.mxu0 0.0
  %224 = vmatmul.mubr.f32.gmra.mrb[0].mxu0 %v67
  %v225 = vpop.f32.mrb[0].mxu0
  %v226 = vadd.f32 0.0, %v225
  %v227 = vpop.f32.mrb[0].mxu0
  %228 = vdwg.mxu0
  %v229 = vadd.f32 %v36, %v151
  %v230 = vadd.f32 %v37, %v156
  %v231 = vadd.f32 %v38, %v161
  %v232 = vadd.f32 %v39, %v166
  %v233 = vadd.f32 %v40, %v171
  %v234 = vadd.f32 %v41, %v176
  %v235 = vadd.f32 %v42, %v181
  %v236 = vadd.f32 %v43, %v186
  %v237 = vadd.f32 %v44, %v191
  %v238 = vadd.f32 %v45, %v196
  %v239 = vadd.f32 %v46, %v201
  %v240 = vadd.f32 %v47, %v206
  %v241 = vadd.f32 %v48, %v211
  %v242 = vadd.f32 %v49, %v216
  %v243 = vadd.f32 %v50, %v221
  %v244 = vadd.f32 %v51, %v226
  %vm245 = vcmask 31744
  %246 = vst.msk [vmem:[#allocation2] sm:$0xff] %vm245, %v229
  %247 = vst.msk [vmem:[#allocation2 + $0x8] sm:$0xff] %vm245, %v230
  %248 = vst.msk [vmem:[#allocation2 + $0x10] sm:$0xff] %vm245, %v231
  %249 = vst.msk [vmem:[#allocation2 + $0x18] sm:$0xff] %vm245, %v232
  %250 = vst.msk [vmem:[#allocation2 + $0x20] sm:$0xff] %vm245, %v233
  %251 = vst.msk [vmem:[#allocation2 + $0x28] sm:$0xff] %vm245, %v234
  %252 = vst.msk [vmem:[#allocation2 + $0x30] sm:$0xff] %vm245, %v235
  %253 = vst.msk [vmem:[#allocation2 + $0x38] sm:$0xff] %vm245, %v236
  %254 = vst.msk [vmem:[#allocation2 + $0x40] sm:$0xff] %vm245, %v237
  %255 = vst.msk [vmem:[#allocation2 + $0x48] sm:$0xff] %vm245, %v238
  %256 = vst.msk [vmem:[#allocation2 + $0x50] sm:$0xff] %vm245, %v239
  %257 = vst.msk [vmem:[#allocation2 + $0x58] sm:$0xff] %vm245, %v240
  %258 = vst.msk [vmem:[#allocation2 + $0x60] sm:$0xff] %vm245, %v241
  %259 = vst.msk [vmem:[#allocation2 + $0x68] sm:$0xff] %vm245, %v242
  %260 = vst.msk [vmem:[#allocation2 + $0x70] sm:$0xff] %vm245, %v243
  %261 = vst.msk [vmem:[#allocation2 + $0x78] sm:$0xff] %vm245, %v244
  // Predicated region
  $region18: #{tpu_custom_call.1} parent=0 // pred_check
    %p262 = pneg %p15
  $region19: #{tpu_custom_call.1} parent=0 // pred_check_branch
    %264 = sbr.rel (%p262) target = $region21
  $region20: #{tpu_custom_call.1} parent=0 // pred_region
    %v265 = vld [vmem:[#allocation2] sm:$0xff]
    %v266 = vld [vmem:[#allocation2 + $0x8] sm:$0xff]
    %v267 = vld [vmem:[#allocation2 + $0x10] sm:$0xff]
    %v268 = vld [vmem:[#allocation2 + $0x18] sm:$0xff]
    %v269 = vld [vmem:[#allocation2 + $0x20] sm:$0xff]
    %v270 = vld [vmem:[#allocation2 + $0x28] sm:$0xff]
    %v271 = vld [vmem:[#allocation2 + $0x30] sm:$0xff]
    %v272 = vld [vmem:[#allocation2 + $0x38] sm:$0xff]
    %v273 = vld [vmem:[#allocation2 + $0x40] sm:$0xff]
    %v274 = vld [vmem:[#allocation2 + $0x48] sm:$0xff]
    %v275 = vld [vmem:[#allocation2 + $0x50] sm:$0xff]
    %v276 = vld [vmem:[#allocation2 + $0x58] sm:$0xff]
    %v277 = vld [vmem:[#allocation2 + $0x60] sm:$0xff]
    %v278 = vld [vmem:[#allocation2 + $0x68] sm:$0xff]
    %v279 = vld [vmem:[#allocation2 + $0x70] sm:$0xff]
    %v280 = vld [vmem:[#allocation2 + $0x78] sm:$0xff]
    %s281 = sld [smem:[#allocation3]]
    %v282 = vstv %s281
    %v283 = vadd.f32 %v265, %v282
    %v284 = vadd.f32 %v266, %v282
    %v285 = vadd.f32 %v267, %v282
    %v286 = vadd.f32 %v268, %v282
    %v287 = vadd.f32 %v269, %v282
    %v288 = vadd.f32 %v270, %v282
    %v289 = vadd.f32 %v271, %v282
    %v290 = vadd.f32 %v272, %v282
    %v291 = vadd.f32 %v273, %v282
    %v292 = vadd.f32 %v274, %v282
    %v293 = vadd.f32 %v275, %v282
    %v294 = vadd.f32 %v276, %v282
    %v295 = vadd.f32 %v277, %v282
    %v296 = vadd.f32 %v278, %v282
    %v297 = vadd.f32 %v279, %v282
    %v298 = vadd.f32 %v280, %v282
    %299 = vst.msk [vmem:[%s3] sm:$0xff] %vm245, %v283
    %300 = vst.msk [vmem:[%s3 + $0x8] sm:$0xff] %vm245, %v284
    %301 = vst.msk [vmem:[%s3 + $0x10] sm:$0xff] %vm245, %v285
    %302 = vst.msk [vmem:[%s3 + $0x18] sm:$0xff] %vm245, %v286
    %303 = vst.msk [vmem:[%s3 + $0x20] sm:$0xff] %vm245, %v287
    %304 = vst.msk [vmem:[%s3 + $0x28] sm:$0xff] %vm245, %v288
    %305 = vst.msk [vmem:[%s3 + $0x30] sm:$0xff] %vm245, %v289
    %306 = vst.msk [vmem:[%s3 + $0x38] sm:$0xff] %vm245, %v290
    %307 = vst.msk [vmem:[%s3 + $0x40] sm:$0xff] %vm245, %v291
    %308 = vst.msk [vmem:[%s3 + $0x48] sm:$0xff] %vm245, %v292
    %309 = vst.msk [vmem:[%s3 + $0x50] sm:$0xff] %vm245, %v293
    %310 = vst.msk [vmem:[%s3 + $0x58] sm:$0xff] %vm245, %v294
    %311 = vst.msk [vmem:[%s3 + $0x60] sm:$0xff] %vm245, %v295
    %312 = vst.msk [vmem:[%s3 + $0x68] sm:$0xff] %vm245, %v296
    %313 = vst.msk [vmem:[%s3 + $0x70] sm:$0xff] %vm245, %v297
    %314 = vst.msk [vmem:[%s3 + $0x78] sm:$0xff] %vm245, %v298
  $region21: #{tpu_custom_call.1} parent=0 // pred_fallthru
    _
  // Predicated region
  $region22: #{tpu_custom_call.1} parent=0 // pred_check
    _
  $region23: #{tpu_custom_call.1} parent=0 // pred_check_branch
    %316 = sbr.rel (0) target = $region25
  $region24: #{tpu_custom_call.1} parent=0 // pred_region
    _
  $region25: #{tpu_custom_call.1} parent=0 // pred_fallthru
    _
  // Predicated region
  $region26: #{tpu_custom_call.1} parent=0 // pred_check
    _
  $region27: #{tpu_custom_call.1} parent=0 // pred_check_branch
    %318 = sbr.rel (0) target = $region29
  $region28: #{tpu_custom_call.1} parent=0 // pred_region
    _
  $region29: #{tpu_custom_call.1} parent=0 // pred_fallthru
    _

</llo_original>
